<compile_context>
chip_gen: v7x
topology: tpu7x:2x2x1
jax: 0.10.0
libtpu: 0.0.40
codegen_flags: <defaults>
</compile_context>

<pallas_src>
import jax
import jax.numpy as jnp
from jax.experimental import pallas as pl
from jax.experimental.pallas import tpu as pltpu


LANES = 128
SUBLANES = 8
DEFAULT_TILE_ROWS = 1024          # (1024, 128) f32 block = 512 KiB per stream
DEFAULT_MIN_PALLAS_ELEMS = 1 << 18  # below ~1 MiB/input, plain XLA is faster


def _multiloss_kernel(w_ref, x1_ref, x2_ref, x3_ref, o_ref):
    # w_ref: SMEM (3,) float32, already sigmoid-activated in the wrapper.
    # x*_ref / o_ref: (tile_rows, 128) VMEM tiles. Pure VPU weighted sum.
    w0 = w_ref[0]
    w1 = w_ref[1]
    w2 = w_ref[2]
    acc = w0 * x1_ref[...] + w1 * x2_ref[...] + w2 * x3_ref[...]
    o_ref[...] = acc.astype(o_ref.dtype)


def _fused_reference(weights, x1, x2, x3):
    # Small-input fallback: let XLA fuse the elementwise expression.
    w = weights.astype(jnp.float32)
    y = w[0] * x1.astype(jnp.float32) + w[1] * x2.astype(jnp.float32) \
        + w[2] * x3.astype(jnp.float32)
    return y.astype(x1.dtype)


def multi_loss(paras, x1, x2, x3, *,
               tile_rows=DEFAULT_TILE_ROWS,
               min_pallas_elems=DEFAULT_MIN_PALLAS_ELEMS):
    """Pallas implementation of MultiLoss.forward.

    paras: (3,) float parameters (pre-sigmoid).
    x1, x2, x3: identically-shaped float arrays (NCHW or anything elementwise).
    """
    assert x1.shape == x2.shape == x3.shape
    orig_shape = x1.shape
    dtype = x1.dtype

    # Sigmoid hoisted out of the kernel: computed once, not per grid step.
    weights = jax.nn.sigmoid(paras.astype(jnp.float32))

    n = x1.size
    if n < min_pallas_elems:
        # Kernel launch + reshape overhead dominates at tiny sizes.
        return _fused_reference(weights, x1, x2, x3)

    # Lane-dense 2-D slab: pad flattened length only up to a multiple of 128.
    rows = pl.cdiv(n, LANES)
    n_pad = rows * LANES

    def prep(x):
        xf = x.reshape(-1)
        if n_pad != n:
            xf = jnp.pad(xf, (0, n_pad - n))
        return xf.reshape(rows, LANES)

    x1f, x2f, x3f = prep(x1), prep(x2), prep(x3)

    # Clamp the block height to the slab (rounded to full sublanes); keep it a
    # multiple of 8 so the (8, 128) tiling constraint always holds.
    tr = min(int(tile_rows), rows)
    tr = max(SUBLANES, (tr // SUBLANES) * SUBLANES)

    grid = (pl.cdiv(rows, tr),)  # partial last block handled by Pallas

    vmem_spec = pl.BlockSpec((tr, LANES), lambda i: (i, 0))
    smem_spec = pl.BlockSpec(memory_space=pltpu.MemorySpace.SMEM)

    # 4 streams x 2 pipeline buffers, plus generous headroom; stays within the
    # physical/scoped budget of every generation (incl. v7x's 64 MiB VMEM).
    buf_bytes = 4 * 2 * tr * LANES * jnp.dtype(dtype).itemsize
    vmem_limit = int(min(48 << 20, max(32 << 20, 2 * buf_bytes)))

    out = pl.pallas_call(
        _multiloss_kernel,
        out_shape=jax.ShapeDtypeStruct((rows, LANES), dtype),
        grid=grid,
        in_specs=[smem_spec, vmem_spec, vmem_spec, vmem_spec],
        out_specs=vmem_spec,
        compiler_params=pltpu.CompilerParams(
            dimension_semantics=("parallel",),
            vmem_limit_bytes=vmem_limit,
        ),
    )(weights, x1f, x2f, x3f)

    out = out.reshape(-1)
    if n_pad != n:
        out = out[:n]
    return out.reshape(orig_shape)


if __name__ == "__main__":
    # Deterministic parameter init exactly as in the module's __init__.
    paras = jnp.array([0.5, 0.2, 0.3], dtype=jnp.float32)
    w_ref = jax.nn.sigmoid(paras)

    key = jax.random.PRNGKey(0)

    # 1) Aligned NCHW case (module-sized small shape), Pallas path forced.
    k1, k2, k3, k4, k5, k6 = jax.random.split(key, 6)
    shape = (2, 4, 16, 16)
    x1 = jax.random.normal(k1, shape, dtype=jnp.float32)
    x2 = jax.random.normal(k2, shape, dtype=jnp.float32)
    x3 = jax.random.normal(k3, shape, dtype=jnp.float32)

    y = multi_loss(paras, x1, x2, x3, min_pallas_elems=0)
    y = jax.block_until_ready(y)
    y_ref = w_ref[0] * x1 + w_ref[1] * x2 + w_ref[2] * x3
    assert y.shape == shape
    assert jnp.allclose(y, y_ref, atol=1e-6, rtol=1e-6)

    # 2) Non-128-aligned shape: exercises the minimal-pad + partial-block path.
    shape2 = (3, 5, 17, 23)  # 5865 elems, not a multiple of 128
    a1 = jax.random.normal(k4, shape2, dtype=jnp.float32)
    a2 = jax.random.normal(k5, shape2, dtype=jnp.float32)
    a3 = jax.random.normal(k6, shape2, dtype=jnp.float32)
    y2 = multi_loss(paras, a1, a2, a3, min_pallas_elems=0)
    y2 = jax.block_until_ready(y2)
    y2_ref = w_ref[0] * a1 + w_ref[1] * a2 + w_ref[2] * a3
    assert y2.shape == shape2
    assert jnp.allclose(y2, y2_ref, atol=1e-6, rtol=1e-6)

    # 3) bf16 inputs: kernel computes in f32 and casts the store explicitly.
    b1 = x1.astype(jnp.bfloat16)
    b2 = x2.astype(jnp.bfloat16)
    b3 = x3.astype(jnp.bfloat16)
    y3 = multi_loss(paras, b1, b2, b3, min_pallas_elems=0)
    y3 = jax.block_until_ready(y3)
    y3_ref = (w_ref[0] * b1.astype(jnp.float32)
              + w_ref[1] * b2.astype(jnp.float32)
              + w_ref[2] * b3.astype(jnp.float32)).astype(jnp.bfloat16)
    assert y3.dtype == jnp.bfloat16
    assert jnp.allclose(y3.astype(jnp.float32), y3_ref.astype(jnp.float32),
                        atol=2e-2, rtol=2e-2)

    print("KERNEL_OK")
</pallas_src>

<mosaic_0001>
module attributes {stable_mosaic.version = 11 : i64} {
  func.func @_multiloss_kernel(%arg0: i32, %arg1: memref<3xf32, #tpu.memory_space<smem>>, %arg2: memref<16x128xf32, #tpu.memory_space<vmem>>, %arg3: memref<16x128xf32, #tpu.memory_space<vmem>>, %arg4: memref<16x128xf32, #tpu.memory_space<vmem>>, %arg5: memref<16x128xf32, #tpu.memory_space<vmem>>) attributes {dimension_semantics = [#tpu.dimension_semantics<parallel>], iteration_bounds = array<i64: 1>, scalar_prefetch = 0 : i64, scratch_operands = 0 : i64, tpu.core_type = #tpu.core_type<tc>, window_params = [{transform_indices = @transform_0, window_bounds = array<i64: 3>}, {transform_indices = @transform_1, window_bounds = array<i64: 16, 128>}, {transform_indices = @transform_2, window_bounds = array<i64: 16, 128>}, {transform_indices = @transform_3, window_bounds = array<i64: 16, 128>}, {transform_indices = @transform_4, window_bounds = array<i64: 16, 128>}]} {
    %c0 = arith.constant 0 : index
    %0 = memref.load %arg1[%c0] : memref<3xf32, #tpu.memory_space<smem>>
    %c1 = arith.constant 1 : index
    %1 = memref.load %arg1[%c1] : memref<3xf32, #tpu.memory_space<smem>>
    %c2 = arith.constant 2 : index
    %2 = memref.load %arg1[%c2] : memref<3xf32, #tpu.memory_space<smem>>
    %c0_0 = arith.constant 0 : index
    %c0_1 = arith.constant 0 : index
    %3 = vector.load %arg2[%c0_0, %c0_1] : memref<16x128xf32, #tpu.memory_space<vmem>>, vector<16x128xf32>
    %4 = vector.broadcast %0 : f32 to vector<16x128xf32>
    %5 = arith.mulf %4, %3 : vector<16x128xf32>
    %c0_2 = arith.constant 0 : index
    %c0_3 = arith.constant 0 : index
    %6 = vector.load %arg3[%c0_2, %c0_3] : memref<16x128xf32, #tpu.memory_space<vmem>>, vector<16x128xf32>
    %7 = vector.broadcast %1 : f32 to vector<16x128xf32>
    %8 = arith.mulf %7, %6 : vector<16x128xf32>
    %9 = arith.addf %5, %8 : vector<16x128xf32>
    %c0_4 = arith.constant 0 : index
    %c0_5 = arith.constant 0 : index
    %10 = vector.load %arg4[%c0_4, %c0_5] : memref<16x128xf32, #tpu.memory_space<vmem>>, vector<16x128xf32>
    %11 = vector.broadcast %2 : f32 to vector<16x128xf32>
    %12 = arith.mulf %11, %10 : vector<16x128xf32>
    %13 = arith.addf %9, %12 : vector<16x128xf32>
    %c0_6 = arith.constant 0 : index
    %c0_7 = arith.constant 0 : index
    %14 = vector.load %arg5[%c0_6, %c0_7] : memref<16x128xf32, #tpu.memory_space<vmem>>, vector<16x128xf32>
    tpu.vector_store %arg5[%c0_6, %c0_7], %13 {strides = array<i32>} : memref<16x128xf32, #tpu.memory_space<vmem>>, vector<16x128xf32>,
    return
  }
  func.func @transform_0(%arg0: i32) -> i32 {
    %c0_i32 = arith.constant 0 : i32
    %c0_i32_0 = arith.constant 0 : i32
    return %c0_i32 : i32
  }
  func.func @transform_1(%arg0: i32) -> (i32, i32) {
    %c0_i32 = arith.constant 0 : i32
    %c0_i32_0 = arith.constant 0 : i32
    return %arg0, %c0_i32 : i32, i32
  }
  func.func @transform_2(%arg0: i32) -> (i32, i32) {
    %c0_i32 = arith.constant 0 : i32
    %c0_i32_0 = arith.constant 0 : i32
    return %arg0, %c0_i32 : i32, i32
  }
  func.func @transform_3(%arg0: i32) -> (i32, i32) {
    %c0_i32 = arith.constant 0 : i32
    %c0_i32_0 = arith.constant 0 : i32
    return %arg0, %c0_i32 : i32, i32
  }
  func.func @transform_4(%arg0: i32) -> (i32, i32) {
    %c0_i32 = arith.constant 0 : i32
    %c0_i32_0 = arith.constant 0 : i32
    return %arg0, %c0_i32 : i32, i32
  }
}

</mosaic_0001>

<llo_original>
// kernel: tpu_custom_call.1
$region0: #{tpu_custom_call.1}
  #allocation0 [shape = 'u32[]', space=smem, size = 0x4, offset = 0x4, fixed_abs, tag = 'smem constant byte address 0x4 - core index']
  #allocation1 [shape = 'u32[144,128]{1,0:T(1,128)}', space=vmem, size = 0x12000, scoped, tag = 'internal scratch']
  %s0 = inlined_call_operand.hbm [shape: f32[3], index: 0, kind: input, shape index: {}]
  %s1 = inlined_call_operand.hbm [shape: f32[16,128], index: 1, kind: input, shape index: {}]
  %s2 = inlined_call_operand.hbm [shape: f32[16,128], index: 2, kind: input, shape index: {}]
  %s3 = inlined_call_operand.hbm [shape: f32[16,128], index: 3, kind: input, shape index: {}]
  %s4 = inlined_call_operand.hbm [shape: f32[16,128], index: 4, kind: output, shape index: {}]
  %s5 = sld [smem:[#allocation0]]
  $region42: #{tpu_custom_call.1} parent=0
    _
  %s7 = ssub.s32 1, %s5
  %s8 = scalar_select 0, %s7, %s5
  $region1: #{tpu_custom_call.1} parent=0
    #allocation2 [shape = 'u8[512]{0}', space=smem, size = 0x200, scoped, tag = 'input window, operand 0, single buffered']
    #allocation3 [shape = 's32[1]{0}', space=sflag, size = 0x4, scoped, tag = 'scoped memory for tpu_custom_call.1']
    #allocation4 [shape = 's32[1]{0}', space=sflag, size = 0x4, scoped, tag = 'scoped memory for tpu_custom_call.1']
    #allocation5 [shape = 's32[1]{0}', space=sflag, size = 0x4, scoped, tag = 'scoped memory for tpu_custom_call.1']
    #allocation6 [shape = 'u8[8192]{0}', space=vmem, size = 0x2000, scoped, tag = 'input window, operand 1, single buffered']
    #allocation7 [shape = 'u8[8192]{0}', space=vmem, size = 0x2000, scoped, tag = 'input window, operand 2, single buffered']
    #allocation8 [shape = 's32[1]{0}', space=sflag, size = 0x4, scoped, tag = 'scoped memory for tpu_custom_call.1']
    #allocation9 [shape = 'u8[8192]{0}', space=vmem, size = 0x2000, scoped, tag = 'input window, operand 3, single buffered']
    #allocation10 [shape = 'u8[8192]{0}', space=vmem, size = 0x2000, scoped, tag = 'output window, operand 0, single buffered']
    %9 = vsyncpa [#allocation5], 0
    %10 = vsyncpa [#allocation3], 0
    %11 = vsyncpa [#allocation8], 0
    %12 = vsyncpa [#allocation4], 0
    // Predicated region
    $region2: #{tpu_custom_call.1} parent=1 // pred_check
      _
    $region3: #{tpu_custom_call.1} parent=1 // pred_check_branch
      %14 = sbr.rel (0) target = $region5
    $region4: #{tpu_custom_call.1} parent=1 // pred_region
      %s16 = ssub.s32 16, 16
      %17 = vsyncadd [#allocation5], %s16
      %20 = dma.hbm_to_smem %s0, 16, [#allocation2], [#allocation5]
    $region5: #{tpu_custom_call.1} parent=1 // pred_fallthru
      _
    // Predicated region
    $region6: #{tpu_custom_call.1} parent=1 // pred_check
      _
    $region7: #{tpu_custom_call.1} parent=1 // pred_check_branch
      %22 = sbr.rel (0) target = $region9
    $region8: #{tpu_custom_call.1} parent=1 // pred_region
      %s24 = ssub.s32 256, 256
      %25 = vsyncadd [#allocation3], %s24
      %s26 = sshll.u32 [#allocation6], 4
      %s27 = int_to_ptr.vmem [resolvable:$true] %s26
      %32 = dma.hbm_to_vmem [thread:$0]  %s1, 256, %s27, [#allocation3], 128, 128, 8
    $region9: #{tpu_custom_call.1} parent=1 // pred_fallthru
      _
    // Predicated region
    $region10: #{tpu_custom_call.1} parent=1 // pred_check
      _
    $region11: #{tpu_custom_call.1} parent=1 // pred_check_branch
      %34 = sbr.rel (0) target = $region13
    $region12: #{tpu_custom_call.1} parent=1 // pred_region
      %s36 = ssub.s32 256, 256
      %37 = vsyncadd [#allocation8], %s36
      %s38 = sshll.u32 [#allocation7], 4
      %s39 = int_to_ptr.vmem [resolvable:$true] %s38
      %44 = dma.hbm_to_vmem [thread:$0]  %s2, 256, %s39, [#allocation8], 128, 128, 8
    $region13: #{tpu_custom_call.1} parent=1 // pred_fallthru
      _
    // Predicated region
    $region14: #{tpu_custom_call.1} parent=1 // pred_check
      _
    $region15: #{tpu_custom_call.1} parent=1 // pred_check_branch
      %46 = sbr.rel (0) target = $region17
    $region16: #{tpu_custom_call.1} parent=1 // pred_region
      %s48 = ssub.s32 256, 256
      %49 = vsyncadd [#allocation8], %s48
      %s50 = sshll.u32 [#allocation9], 4
      %s51 = int_to_ptr.vmem [resolvable:$true] %s50
      %56 = dma.hbm_to_vmem [thread:$0]  %s3, 256, %s51, [#allocation8], 128, 128, 8
    $region17: #{tpu_custom_call.1} parent=1 // pred_fallthru
      _
    // Predicated region
    $region18: #{tpu_custom_call.1} parent=1 // pred_check
      _
    $region19: #{tpu_custom_call.1} parent=1 // pred_check_branch
      %58 = sbr.rel (0) target = $region21
    $region20: #{tpu_custom_call.1} parent=1 // pred_region
      %59 = dma.done [#allocation5], 16
    $region21: #{tpu_custom_call.1} parent=1 // pred_fallthru
      _
    // Predicated region
    $region22: #{tpu_custom_call.1} parent=1 // pred_check
      _
    $region23: #{tpu_custom_call.1} parent=1 // pred_check_branch
      %61 = sbr.rel (0) target = $region25
    $region24: #{tpu_custom_call.1} parent=1 // pred_region
      %62 = dma.done [#allocation3], 256
    $region25: #{tpu_custom_call.1} parent=1 // pred_fallthru
      _
    // Predicated region
    $region26: #{tpu_custom_call.1} parent=1 // pred_check
      _
    $region27: #{tpu_custom_call.1} parent=1 // pred_check_branch
      %64 = sbr.rel (0) target = $region29
    $region28: #{tpu_custom_call.1} parent=1 // pred_region
      %65 = dma.done [#allocation8], 256
    $region29: #{tpu_custom_call.1} parent=1 // pred_fallthru
      _
    // Predicated region
    $region30: #{tpu_custom_call.1} parent=1 // pred_check
      _
    $region31: #{tpu_custom_call.1} parent=1 // pred_check_branch
      %67 = sbr.rel (0) target = $region33
    $region32: #{tpu_custom_call.1} parent=1 // pred_region
      %68 = dma.done [#allocation8], 256
    $region33: #{tpu_custom_call.1} parent=1 // pred_fallthru
      _
    %69 = sfence
    %s70 = sld [smem:[#allocation2]]
    %s71 = sld [smem:[#allocation2 + $0x1]]
    %s72 = sld [smem:[#allocation2 + $0x2]]
    %v73 = vld [vmem:[#allocation6] sm:$0xff]
    %v74 = vld [vmem:[#allocation6 + $0x8] sm:$0xff]
    %v75 = vstv %s70
    %v76 = vmul.f32 %v75, %v73
    %v77 = vmul.f32 %v75, %v74
    %v78 = vld [vmem:[#allocation7] sm:$0xff]
    %v79 = vld [vmem:[#allocation7 + $0x8] sm:$0xff]
    %v80 = vstv %s71
    %v81 = vmul.f32 %v80, %v78
    %v82 = vmul.f32 %v80, %v79
    %v83 = vadd.f32 %v76, %v81
    %v84 = vadd.f32 %v77, %v82
    %v85 = vld [vmem:[#allocation9] sm:$0xff]
    %v86 = vld [vmem:[#allocation9 + $0x8] sm:$0xff]
    %v87 = vstv %s72
    %v88 = vmul.f32 %v87, %v85
    %v89 = vmul.f32 %v87, %v86
    %v90 = vadd.f32 %v83, %v88
    %v91 = vadd.f32 %v84, %v89
    %92 = vst [vmem:[#allocation10] sm:$0xff] %v90
    %93 = vst [vmem:[#allocation10 + $0x8] sm:$0xff] %v91
    // Predicated region
    $region34: #{tpu_custom_call.1} parent=1 // pred_check
      _
    $region35: #{tpu_custom_call.1} parent=1 // pred_check_branch
      %95 = sbr.rel (0) target = $region37
    $region36: #{tpu_custom_call.1} parent=1 // pred_region
      %s97 = ssub.s32 256, 256
      %98 = vsyncadd [#allocation4], %s97
      %s99 = sshll.u32 [#allocation10], 4
      %s100 = int_to_ptr.vmem [resolvable:$true] %s99
      %105 = dma.vmem_to_hbm [thread:$0]  %s100, 256, %s4, [#allocation4], 128, 128, 8
    $region37: #{tpu_custom_call.1} parent=1 // pred_fallthru
      _
    // Predicated region
    $region38: #{tpu_custom_call.1} parent=1 // pred_check
      _
    $region39: #{tpu_custom_call.1} parent=1 // pred_check_branch
      %107 = sbr.rel (0) target = $region41
    $region40: #{tpu_custom_call.1} parent=1 // pred_region
      %108 = dma.done [#allocation4], 256
    $region41: #{tpu_custom_call.1} parent=1 // pred_fallthru
      _
    %109 = vsyncpa [#allocation3], 1
    %110 = vsyncpa [#allocation8], 1
    %111 = vsyncpa [#allocation4], 1
    %112 = vsyncpa [#allocation5], 1

</llo_original>
